<compile_context>
chip_gen: v6e
topology: v6e:2x2x1
jax: 0.10.0
libtpu: 0.0.40
codegen_flags: <defaults>
</compile_context>

<pallas_src>
import functools

import jax
import jax.numpy as jnp
from jax.experimental import pallas as pl
from jax.experimental.pallas import tpu as pltpu


# ----------------------------------------------------------------------------
# Helpers
# ----------------------------------------------------------------------------
def _round_up(x, m):
    return (x + m - 1) // m * m


def _pad_cast(x, shape, dtype):
    """Cast then zero-pad to `shape` in a single pad op."""
    x = x.astype(dtype)
    pads = [(0, s - d) for d, s in zip(x.shape, shape)]
    if any(p != (0, 0) for p in pads):
        x = jnp.pad(x, pads)
    return x


def _patchify(x, p1, p2):
    # x: [B, C, H, W] -> [B, h*w, C*p1*p2]; column order (C, p1, p2) matches the
    # flattened Conv2d weight of PatchEmbed.proj; token order (h, w) row-major.
    B, C, H, W = x.shape
    h, w = H // p1, W // p2
    x = x.reshape(B, C, h, p1, w, p2)
    x = x.transpose(0, 2, 4, 1, 3, 5)  # B h w C p1 p2
    return x.reshape(B, h * w, C * p1 * p2)


def _patchify_head_order(x, p1, p2):
    # x: [B, C, H, W] -> [B, h*w, p1*p2*C]; column order (p1, p2, C) matches the
    # head output layout 'b h w (p1 p2 c_out)' so the residual can be added in
    # patch space inside the kernel.
    B, C, H, W = x.shape
    h, w = H // p1, W // p2
    x = x.reshape(B, C, h, p1, w, p2)
    x = x.transpose(0, 2, 4, 3, 5, 1)  # B h w p1 p2 C
    return x.reshape(B, h * w, p1 * p2 * C)


def _device_vmem_bytes():
    try:
        return int(pltpu.get_tpu_info().vmem_capacity_bytes)
    except Exception:
        return 64 * 1024 * 1024  # conservative (v7x-sized) fallback


def _plan(hw, Kc, Kp, E, D):
    """Generation-aware padding / tiling / VMEM budgeting."""
    kc_pad = _round_up(Kc, 128)
    kp_pad = _round_up(Kp, 128)
    e_pad = _round_up(E, 128)
    d_pad = _round_up(D, 128)
    # TODO(synk): on v6e/v7x with MXU-bound real dims, consider rounding E/D to
    # 256 (2x256x256 MXU) when the overshoot is <15%; keep 128 on v5e.

    vmem_cap = _device_vmem_bytes()
    weight_bytes = (kc_pad + kp_pad) * e_pad * 2 + e_pad * d_pad * 2  # bf16
    # Single-buffer the constant-index weights only when they are big enough
    # for double buffering to hurt (real SFNO dims); demo weights stay default.
    single_buffer_weights = weight_bytes >= (4 << 20) and hasattr(pl, "Buffered")
    wmult = 1 if single_buffer_weights else 2

    budget = int(vmem_cap * 0.8)
    tm = min(512 if vmem_cap >= (100 << 20) else 256, _round_up(hw, 8))
    while True:
        stream = tm * (2 * kc_pad + 2 * kp_pad + 2 * e_pad + 4 * d_pad + 4 * d_pad)
        need = wmult * weight_bytes + 2 * stream + 2 * tm * e_pad + (2 << 20)
        if need <= budget or tm <= 8:
            break
        tm = max(8, _round_up(tm // 2, 8))
    vmem_limit = int(min(max(need + (4 << 20), 32 << 20), int(vmem_cap * 0.9)))

    return {
        "kc_pad": kc_pad, "kp_pad": kp_pad, "e_pad": e_pad, "d_pad": d_pad,
        "tm": tm, "hw_pad": _round_up(hw, tm),
        "single_buffer_weights": single_buffer_weights,
        "vmem_limit": vmem_limit,
    }


# ----------------------------------------------------------------------------
# Fused Pallas kernel: patch-embed(+bias+pos) -> [SFNO identity] -> head -> +residual
# ----------------------------------------------------------------------------
def _sfno_fused_kernel(cpatch_ref, ppatch_ref, wc_ref, wp_ref, bpos_ref, wh_ref,
                       resid_ref, o_ref, tok_ref):
    # cpatch_ref : [1, TM, Kc]  bf16   constant-channel patch rows
    # ppatch_ref : [1, TM, Kp]  bf16   prognostic-channel patch rows
    # wc_ref     : [Kc, E]      bf16   patch-embed weight (constant rows)
    # wp_ref     : [Kp, E]      bf16   patch-embed weight (prognostic rows)
    # bpos_ref   : [TM, E]      bf16   conv bias + pos_embed for this token block
    # wh_ref     : [E, D]       bf16   head weight (Linear, bias=False)
    # resid_ref  : [1, TM, D]   f32    previous prognostic frame, head column order
    # o_ref      : [1, TM, D]   f32
    # tok_ref    : [TM, E]      bf16   VMEM scratch staging of the embed output
    acc = jnp.dot(cpatch_ref[0], wc_ref[...], preferred_element_type=jnp.float32)
    acc = acc + jnp.dot(ppatch_ref[0], wp_ref[...], preferred_element_type=jnp.float32)
    acc = acc + bpos_ref[...].astype(jnp.float32)   # f32 VPU add (no bf16 VPU on v5e)
    # pos_drop(p=0.0) -> identity; self.norm never applied in reference forward.
    # TODO(synk): SFNO spectral core source not provided -> identity here.
    tok_ref[...] = acc.astype(jnp.bfloat16)          # bf16 staging (halves spill / MXU feed)
    head = jnp.dot(tok_ref[...], wh_ref[...], preferred_element_type=jnp.float32)
    o_ref[0] = head + resid_ref[0]                   # fused residual add (f32)


def sfno_fused_step(const_patches, prog_patches, wc, wp, bias_pos, wh, resid, plan):
    B, hw_pad, kc_pad = const_patches.shape
    kp_pad = prog_patches.shape[-1]
    e_pad = wc.shape[1]
    d_pad = wh.shape[1]
    tm = plan["tm"]
    n_blk = hw_pad // tm

    def _weight_spec(shape):
        index_map = lambda j, b: (0,) * len(shape)
        if plan["single_buffer_weights"]:
            try:
                return pl.BlockSpec(shape, index_map, pipeline_mode=pl.Buffered(1))
            except (TypeError, AttributeError):
                pass
        return pl.BlockSpec(shape, index_map)

    flops = (2 * B * hw_pad * (kc_pad + kp_pad) * e_pad
             + 2 * B * hw_pad * e_pad * d_pad)
    bytes_accessed = sum(int(a.size) * a.dtype.itemsize for a in
                         (const_patches, prog_patches, wc, wp, bias_pos, wh, resid))
    bytes_accessed += B * hw_pad * d_pad * 4

    return pl.pallas_call(
        _sfno_fused_kernel,
        out_shape=jax.ShapeDtypeStruct((B, hw_pad, d_pad), jnp.float32),
        # Batch innermost: bias (index only on j) and weight blocks are reused
        # across consecutive grid steps (DMA skipped), tokens split across cores.
        grid=(n_blk, B),
        in_specs=[
            pl.BlockSpec((1, tm, kc_pad), lambda j, b: (b, j, 0)),
            pl.BlockSpec((1, tm, kp_pad), lambda j, b: (b, j, 0)),
            _weight_spec((kc_pad, e_pad)),            # resident weight
            _weight_spec((kp_pad, e_pad)),            # resident weight
            pl.BlockSpec((tm, e_pad), lambda j, b: (j, 0)),   # per-token-block bias+pos
            _weight_spec((e_pad, d_pad)),             # resident weight
            pl.BlockSpec((1, tm, d_pad), lambda j, b: (b, j, 0)),   # residual stream
        ],
        out_specs=pl.BlockSpec((1, tm, d_pad), lambda j, b: (b, j, 0)),
        scratch_shapes=[pltpu.VMEM((tm, e_pad), jnp.bfloat16)],
        compiler_params=pltpu.CompilerParams(
            dimension_semantics=("parallel", "parallel"),
            vmem_limit_bytes=plan["vmem_limit"],
        ),
        cost_estimate=pl.CostEstimate(flops=flops, transcendentals=0,
                                      bytes_accessed=bytes_accessed),
    )(const_patches, prog_patches, wc, wp, bias_pos, wh, resid)


# ----------------------------------------------------------------------------
# Model forward (glue: reshapes / padding / autoregressive loop in plain JAX)
# ----------------------------------------------------------------------------
def sfnonet_forward(constants, prognostic, params, cfg):
    # constants:  [B, T, Cc, H, W]  (only [:, 0] is used, as in the reference)
    # prognostic: [B, T, Cp, H, W]
    p1, p2 = cfg["patch_size"]
    cs = cfg["context_size"]
    c_out = cfg["out_chans"]
    E = cfg["embed_dim"]

    B, T, Cp, H, W = prognostic.shape
    Cc = constants.shape[2]
    h, w = H // p1, W // p2
    hw = h * w

    Kc = Cc * p1 * p2
    Kp = cs * Cp * p1 * p2
    D = c_out * p1 * p2

    plan = _plan(hw, Kc, Kp, E, D)
    Kc_pad, Kp_pad = plan["kc_pad"], plan["kp_pad"]
    E_pad, D_pad = plan["e_pad"], plan["d_pad"]
    hw_pad = plan["hw_pad"]

    # ---- time-invariant prep (hoisted out of the autoregressive loop) ----
    proj_w = params["proj_w"]                      # [Kc+Kp, E], rows = (C, p1, p2)
    wc = _pad_cast(proj_w[:Kc], (Kc_pad, E_pad), jnp.bfloat16)
    wp = _pad_cast(proj_w[Kc:], (Kp_pad, E_pad), jnp.bfloat16)
    wh = _pad_cast(params["head_w"], (E_pad, D_pad), jnp.bfloat16)
    # conv bias + pos_embed folded once: [hw, E], streamed bf16 (upcast in-kernel).
    bias_pos = _pad_cast(params["pos_embed"][0] + params["proj_b"][None, :],
                         (hw_pad, E_pad), jnp.bfloat16)
    # Constant channels only ever use timestep 0 -> patchify once.
    const_patches = _pad_cast(_patchify(constants[:, 0], p1, p2),
                              (B, hw_pad, Kc_pad), jnp.bfloat16)

    outs = []
    for t in range(cs, T):
        t_start = t - cs
        if t == cs:
            prog_t = prognostic[:, t_start:t]                          # [B, cs, Cp, H, W]
        else:
            prev = jnp.stack(outs[-cs:], axis=1)                       # rolling carry
            if t_start < cs:
                prog_t = jnp.concatenate([prognostic[:, t_start:cs], prev], axis=1)
            else:
                prog_t = prev
        prog_flat = prog_t.reshape(B, cs * Cp, H, W)                   # b (t c) h w
        prog_patches = _pad_cast(_patchify(prog_flat, p1, p2),
                                 (B, hw_pad, Kp_pad), jnp.bfloat16)
        # Previous frame in head column order (p1, p2, c_out): fused residual input.
        resid_patches = _pad_cast(_patchify_head_order(prog_t[:, -1], p1, p2),
                                  (B, hw_pad, D_pad), jnp.float32)

        out_patches = sfno_fused_step(const_patches, prog_patches, wc, wp,
                                      bias_pos, wh, resid_patches, plan)
        dec = out_patches[:, :hw, :D]                                  # drop padding
        # rearrange b h w (p1 p2 c_out) -> b c_out (h p1) (w p2)
        dec = dec.reshape(B, h, w, p1, p2, c_out)
        out = dec.transpose(0, 5, 1, 3, 2, 4).reshape(B, c_out, H, W)  # residual already fused
        outs.append(out)
    return jnp.stack(outs, axis=1)                                     # [B, T-cs, Cp, H, W]


# ----------------------------------------------------------------------------
# Deterministic parameter init (shapes from the module __init__)
# ----------------------------------------------------------------------------
def init_params(key, cfg):
    p1, p2 = cfg["patch_size"]
    E = cfg["embed_dim"]
    Cin = cfg["in_chans"]
    c_out = cfg["out_chans"]
    h = cfg["img_size"][0] // p1
    w = cfg["img_size"][1] // p2
    num_patches = h * w
    k1, k2, k3 = jax.random.split(key, 3)
    # Conv2d(in_chans, E, kernel=patch, stride=patch): torch weight [E, Cin, p1, p2]
    conv_w = 0.02 * jax.random.normal(k1, (E, Cin, p1, p2), jnp.float32)
    proj_w = conv_w.reshape(E, Cin * p1 * p2).T          # [K, E], K-order = (C, p1, p2)
    proj_b = jnp.zeros((E,), jnp.float32)
    pos_embed = 0.02 * jax.random.normal(k2, (1, num_patches, E), jnp.float32)
    # Linear(E, c_out*p1*p2, bias=False): torch weight [D_out, E] -> transpose to [E, D_out]
    head_w_torch = 0.02 * jax.random.normal(k3, (c_out * p1 * p2, E), jnp.float32)
    head_w = head_w_torch.T
    return {
        "proj_w": proj_w,
        "proj_b": proj_b,
        "pos_embed": pos_embed,
        "head_w": head_w,
        # norm params exist in the module but are unused in the forward path:
        "norm_g": jnp.ones((E,), jnp.float32),
        "norm_b": jnp.zeros((E,), jnp.float32),
    }


# ----------------------------------------------------------------------------
if __name__ == "__main__":
    # Small, module-consistent configuration.
    img_h = img_w = 32
    patch = (8, 8)
    constant_channels = 2
    prognostic_channels = 1
    context_size = 1
    embed_dim = 32
    cfg = {
        "img_size": (img_h, img_w),
        "patch_size": patch,
        "embed_dim": embed_dim,
        "in_chans": constant_channels + prognostic_channels * context_size,
        "out_chans": prognostic_channels,
        "context_size": context_size,
    }

    key = jax.random.PRNGKey(0)
    kparam, kc, kp = jax.random.split(key, 3)
    params = init_params(kparam, cfg)

    B, T = 2, 3
    constants = jax.random.normal(kc, (B, T, constant_channels, img_h, img_w), jnp.float32)
    prognostic = jax.random.normal(kp, (B, T, prognostic_channels, img_h, img_w), jnp.float32)

    fwd = jax.jit(functools.partial(sfnonet_forward, params=params, cfg=cfg))
    out = fwd(constants, prognostic)
    jax.block_until_ready(out)
    assert out.shape == (B, T - context_size, prognostic_channels, img_h, img_w)
    assert bool(jnp.all(jnp.isfinite(out)))
    print("KERNEL_OK")
</pallas_src>

<mosaic_0001>
module attributes {stable_mosaic.version = 11 : i64} {
  func.func @_sfno_fused_kernel(%arg0: i32, %arg1: i32, %arg2: memref<1x16x128xbf16, #tpu.memory_space<vmem>>, %arg3: memref<1x16x128xbf16, #tpu.memory_space<vmem>>, %arg4: memref<128x128xbf16, #tpu.memory_space<vmem>>, %arg5: memref<128x128xbf16, #tpu.memory_space<vmem>>, %arg6: memref<16x128xbf16, #tpu.memory_space<vmem>>, %arg7: memref<128x128xbf16, #tpu.memory_space<vmem>>, %arg8: memref<1x16x128xf32, #tpu.memory_space<vmem>>, %arg9: memref<1x16x128xf32, #tpu.memory_space<vmem>>, %arg10: memref<16x128xbf16, #tpu.memory_space<vmem>>) attributes {dimension_semantics = [#tpu.dimension_semantics<parallel>, #tpu.dimension_semantics<parallel>], iteration_bounds = array<i64: 1, 2>, scalar_prefetch = 0 : i64, scratch_operands = 1 : i64, tpu.core_type = #tpu.core_type<tc>, window_params = [{transform_indices = @transform_0, window_bounds = array<i64: 1, 16, 128>}, {transform_indices = @transform_1, window_bounds = array<i64: 1, 16, 128>}, {pipeline_mode = #tpu.pipeline_mode<synchronous>, transform_indices = @transform_2, window_bounds = array<i64: 128, 128>}, {pipeline_mode = #tpu.pipeline_mode<synchronous>, transform_indices = @transform_3, window_bounds = array<i64: 128, 128>}, {transform_indices = @transform_4, window_bounds = array<i64: 16, 128>}, {pipeline_mode = #tpu.pipeline_mode<synchronous>, transform_indices = @transform_5, window_bounds = array<i64: 128, 128>}, {transform_indices = @transform_6, window_bounds = array<i64: 1, 16, 128>}, {transform_indices = @transform_7, window_bounds = array<i64: 1, 16, 128>}]} {
    %c0 = arith.constant 0 : index
    %c0_0 = arith.constant 0 : index
    %c0_1 = arith.constant 0 : index
    %0 = vector.load %arg2[%c0, %c0_0, %c0_1] : memref<1x16x128xbf16, #tpu.memory_space<vmem>>, vector<1x16x128xbf16>
    %1 = vector.shape_cast %0 : vector<1x16x128xbf16> to vector<16x128xbf16>
    %c0_2 = arith.constant 0 : index
    %c0_3 = arith.constant 0 : index
    %2 = vector.load %arg4[%c0_2, %c0_3] : memref<128x128xbf16, #tpu.memory_space<vmem>>, vector<128x128xbf16>
    %cst = arith.constant dense<0.000000e+00> : vector<16x128xf32>
    %3 = tpu.matmul %1, %2, %cst {dimension_numbers = #tpu.dot_dimension_numbers<[1], [0], [0], [1], [0, 0, 1, 1], [], []>} : vector<16x128xbf16>, vector<128x128xbf16>, vector<16x128xf32> -> vector<16x128xf32>
    %c0_4 = arith.constant 0 : index
    %c0_5 = arith.constant 0 : index
    %c0_6 = arith.constant 0 : index
    %4 = vector.load %arg3[%c0_4, %c0_5, %c0_6] : memref<1x16x128xbf16, #tpu.memory_space<vmem>>, vector<1x16x128xbf16>
    %5 = vector.shape_cast %4 : vector<1x16x128xbf16> to vector<16x128xbf16>
    %c0_7 = arith.constant 0 : index
    %c0_8 = arith.constant 0 : index
    %6 = vector.load %arg5[%c0_7, %c0_8] : memref<128x128xbf16, #tpu.memory_space<vmem>>, vector<128x128xbf16>
    %cst_9 = arith.constant dense<0.000000e+00> : vector<16x128xf32>
    %7 = tpu.matmul %5, %6, %cst_9 {dimension_numbers = #tpu.dot_dimension_numbers<[1], [0], [0], [1], [0, 0, 1, 1], [], []>} : vector<16x128xbf16>, vector<128x128xbf16>, vector<16x128xf32> -> vector<16x128xf32>
    %8 = arith.addf %3, %7 : vector<16x128xf32>
    %c0_10 = arith.constant 0 : index
    %c0_11 = arith.constant 0 : index
    %9 = vector.load %arg6[%c0_10, %c0_11] : memref<16x128xbf16, #tpu.memory_space<vmem>>, vector<16x128xbf16>
    %10 = arith.extf %9 : vector<16x128xbf16> to vector<16x128xf32>
    %11 = arith.addf %8, %10 : vector<16x128xf32>
    %12 = arith.truncf %11 : vector<16x128xf32> to vector<16x128xbf16>
    %c0_12 = arith.constant 0 : index
    %c0_13 = arith.constant 0 : index
    %13 = vector.load %arg10[%c0_12, %c0_13] : memref<16x128xbf16, #tpu.memory_space<vmem>>, vector<16x128xbf16>
    tpu.vector_store %arg10[%c0_12, %c0_13], %12 {strides = array<i32>} : memref<16x128xbf16, #tpu.memory_space<vmem>>, vector<16x128xbf16>,
    %c0_14 = arith.constant 0 : index
    %c0_15 = arith.constant 0 : index
    %14 = vector.load %arg10[%c0_14, %c0_15] : memref<16x128xbf16, #tpu.memory_space<vmem>>, vector<16x128xbf16>
    %c0_16 = arith.constant 0 : index
    %c0_17 = arith.constant 0 : index
    %15 = vector.load %arg7[%c0_16, %c0_17] : memref<128x128xbf16, #tpu.memory_space<vmem>>, vector<128x128xbf16>
    %cst_18 = arith.constant dense<0.000000e+00> : vector<16x128xf32>
    %16 = tpu.matmul %14, %15, %cst_18 {dimension_numbers = #tpu.dot_dimension_numbers<[1], [0], [0], [1], [0, 0, 1, 1], [], []>} : vector<16x128xbf16>, vector<128x128xbf16>, vector<16x128xf32> -> vector<16x128xf32>
    %c0_19 = arith.constant 0 : index
    %c0_20 = arith.constant 0 : index
    %c0_21 = arith.constant 0 : index
    %17 = vector.load %arg8[%c0_19, %c0_20, %c0_21] : memref<1x16x128xf32, #tpu.memory_space<vmem>>, vector<1x16x128xf32>
    %18 = vector.shape_cast %17 : vector<1x16x128xf32> to vector<16x128xf32>
    %19 = arith.addf %16, %18 : vector<16x128xf32>
    %c0_22 = arith.constant 0 : index
    %c0_23 = arith.constant 0 : index
    %c0_24 = arith.constant 0 : index
    %20 = vector.load %arg9[%c0_22, %c0_23, %c0_24] : memref<1x16x128xf32, #tpu.memory_space<vmem>>, vector<1x16x128xf32>
    %21 = vector.shape_cast %20 : vector<1x16x128xf32> to vector<16x128xf32>
    %22 = vector.shape_cast %19 : vector<16x128xf32> to vector<1x16x128xf32>
    tpu.vector_store %arg9[%c0_22, %c0_23, %c0_24], %22 {strides = array<i32>} : memref<1x16x128xf32, #tpu.memory_space<vmem>>, vector<1x16x128xf32>,
    return
  }
  func.func @transform_0(%arg0: i32, %arg1: i32) -> (i32, i32, i32) {
    %c0_i32 = arith.constant 0 : i32
    %c0_i32_0 = arith.constant 0 : i32
    return %arg1, %arg0, %c0_i32 : i32, i32, i32
  }
  func.func @transform_1(%arg0: i32, %arg1: i32) -> (i32, i32, i32) {
    %c0_i32 = arith.constant 0 : i32
    %c0_i32_0 = arith.constant 0 : i32
    return %arg1, %arg0, %c0_i32 : i32, i32, i32
  }
  func.func @transform_2(%arg0: i32, %arg1: i32) -> (i32, i32) {
    %c0_i32 = arith.constant 0 : i32
    %c0_i32_0 = arith.constant 0 : i32
    %c0_i32_1 = arith.constant 0 : i32
    return %c0_i32, %c0_i32_0 : i32, i32
  }
  func.func @transform_3(%arg0: i32, %arg1: i32) -> (i32, i32) {
    %c0_i32 = arith.constant 0 : i32
    %c0_i32_0 = arith.constant 0 : i32
    %c0_i32_1 = arith.constant 0 : i32
    return %c0_i32, %c0_i32_0 : i32, i32
  }
  func.func @transform_4(%arg0: i32, %arg1: i32) -> (i32, i32) {
    %c0_i32 = arith.constant 0 : i32
    %c0_i32_0 = arith.constant 0 : i32
    return %arg0, %c0_i32 : i32, i32
  }
  func.func @transform_5(%arg0: i32, %arg1: i32) -> (i32, i32) {
    %c0_i32 = arith.constant 0 : i32
    %c0_i32_0 = arith.constant 0 : i32
    %c0_i32_1 = arith.constant 0 : i32
    return %c0_i32, %c0_i32_0 : i32, i32
  }
  func.func @transform_6(%arg0: i32, %arg1: i32) -> (i32, i32, i32) {
    %c0_i32 = arith.constant 0 : i32
    %c0_i32_0 = arith.constant 0 : i32
    return %arg1, %arg0, %c0_i32 : i32, i32, i32
  }
  func.func @transform_7(%arg0: i32, %arg1: i32) -> (i32, i32, i32) {
    %c0_i32 = arith.constant 0 : i32
    %c0_i32_0 = arith.constant 0 : i32
    return %arg1, %arg0, %c0_i32 : i32, i32, i32
  }
}

</mosaic_0001>

<llo_original>
// kernel: sfnonet_forward.2
$region0: #{sfnonet_forward.2}
  #allocation0 [shape = 'u32[]', space=smem, size = 0x4, offset = 0x4, fixed_abs, tag = 'smem constant byte address 0x4 - core index']
  #allocation1 [shape = 'u32[144,128]{1,0:T(1,128)}', space=vmem, size = 0x12000, scoped, tag = 'internal scratch']
  #allocation2 [shape = 'bf16[16,128]{1,0:T(8,128)(2,1)}', space=vmem, size = 0x1000, scoped, tag = 'scratch operand']
  %s0 = inlined_call_operand.vmem [shape: bf16[2,16,128], index: 0, kind: input, shape index: {}]
  %s1 = inlined_call_operand.vmem [shape: bf16[2,16,128], index: 1, kind: input, shape index: {}]
  %s2 = inlined_call_operand.vmem [shape: bf16[128,128], index: 2, kind: input, shape index: {}]
  %s3 = inlined_call_operand.vmem [shape: bf16[128,128], index: 3, kind: input, shape index: {}]
  %s4 = inlined_call_operand.vmem [shape: bf16[16,128], index: 4, kind: input, shape index: {}]
  %s5 = inlined_call_operand.vmem [shape: bf16[128,128], index: 5, kind: input, shape index: {}]
  %s6 = inlined_call_operand.vmem [shape: f32[2,16,128], index: 6, kind: input, shape index: {}]
  %s7 = inlined_call_operand.vmem [shape: f32[2,16,128], index: 7, kind: output, shape index: {}]
  %s8 = sld [smem:[#allocation0]]
  $region61: #{sfnonet_forward.2} parent=0
    _
  %s10 = ssub.s32 1, %s8
  %s11 = scalar_select 0, %s10, %s8
  loop: start=0, step=1, limit=4
  $region2: #{sfnonet_forward.2} parent=0 // loop_pre_header
    _
  $region3: #{sfnonet_forward.2} parent=0 // loop_header
    %s13 = sphi 0, %s17
    %p14 = scmp.ge.s32.totalorder %s13, 4
    %s20 = sphi 0, %s32
    %s21 = sphi 0, %s28
    %s22 = sphi 0, %s20
    %s23 = sphi 0, %s21
    %s24 = sphi 0, %s22
    %s25 = sphi 0, %s23
    %s37 = sphi 0, %s39
    %s40 = sphi 0, %s37
    %s41 = sphi 0, %s40
    %s57 = sphi 0, %s41
    %s65 = sphi 0, %s67
    %s68 = sphi 0, %s65
    %s69 = sphi 0, %s68
    %s85 = sphi 0, %s69
    %s89 = sphi 0, %s89
    %s91 = sphi 0, %s89
    %s92 = sphi 0, %s91
    %s106 = sphi 0, %s92
    %s110 = sphi 0, %s110
    %s112 = sphi 0, %s110
    %s113 = sphi 0, %s112
    %s127 = sphi 0, %s113
    %s133 = sphi 0, %s135
    %s136 = sphi 0, %s133
    %s137 = sphi 0, %s136
    %s153 = sphi 0, %s137
    %s157 = sphi 0, %s157
    %s159 = sphi 0, %s157
    %s160 = sphi 0, %s159
    %s174 = sphi 0, %s160
    %s182 = sphi 0, %s184
    %s185 = sphi 0, %s182
    %s186 = sphi 0, %s185
    %s202 = sphi 0, %s186
    %s210 = sphi 0, %s212
    %s213 = sphi 0, %s210
    %s214 = sphi 0, %s213
    %s230 = sphi 0, %s214
  $region4: #{sfnonet_forward.2} parent=0 // loop_header_branch
    %16 = sbr.rel (%p14) target = $region8
  $region5: #{sfnonet_forward.2} parent=0 // loop_body
    %s18 = ssub.s32 %s13, 1
    %s19 = ssub.s32 %s13, 2
    %s26 = sadd.s32 1, %s21
    %p27 = scmp.ge.s32.totalorder %s26, 2
    %s28 = scalar_select %p27, 0, %s26
    %s29 = sadd.s32 1, %s20
    %s30 = scalar_select %p27, %s29, %s20
    %p31 = scmp.ge.s32.totalorder %s30, 1
    %s32 = scalar_select %p31, 0, %s30
    %s33 = ssub.s32 %s21, %s28
    %s34 = ssub.s32 %s20, %s32
    %s35 = sor.u32 %s33, %s34
    %p36 = scmp.eq.s32.totalorder %s35, 0
    %s38 = sadd.s32 %s37, 1
    %s39 = scalar_select %p36, %s37, %s38
    %p42 = pneg %p36
    %p43 = scmp.eq.s32.totalorder %s13, 1
    %p44 = por %p42, %p43
    %p45 = scmp.ne.s32.totalorder %s37, %s40
    %p46 = scmp.eq.s32.totalorder %s13, 0
    %p47 = por %p45, %p46
    %p48 = scmp.ne.s32.totalorder %s37, %s40
    %p49 = scmp.eq.s32.totalorder %s18, 1
    %p50 = por %p48, %p49
    %p51 = scmp.ne.s32.totalorder %s40, %s41
    %p52 = scmp.eq.s32.totalorder %s18, 0
    %p53 = por %p51, %p52
    %p54 = scmp.ne.s32.totalorder %s40, %s41
    %p55 = scmp.eq.s32.totalorder %s19, 1
    %p56 = por %p54, %p55
    %p58 = scmp.ne.s32.totalorder %s41, %s57
    %p59 = scmp.eq.s32.totalorder %s19, 0
    %p60 = por %p58, %p59
    %s61 = ssub.s32 %s21, %s28
    %s62 = ssub.s32 %s20, %s32
    %s63 = sor.u32 %s61, %s62
    %p64 = scmp.eq.s32.totalorder %s63, 0
    %s66 = sadd.s32 %s65, 1
    %s67 = scalar_select %p64, %s65, %s66
    %p70 = pneg %p64
    %p71 = scmp.eq.s32.totalorder %s13, 1
    %p72 = por %p70, %p71
    %p73 = scmp.ne.s32.totalorder %s65, %s68
    %p74 = scmp.eq.s32.totalorder %s13, 0
    %p75 = por %p73, %p74
    %p76 = scmp.ne.s32.totalorder %s65, %s68
    %p77 = scmp.eq.s32.totalorder %s18, 1
    %p78 = por %p76, %p77
    %p79 = scmp.ne.s32.totalorder %s68, %s69
    %p80 = scmp.eq.s32.totalorder %s18, 0
    %p81 = por %p79, %p80
    %p82 = scmp.ne.s32.totalorder %s68, %s69
    %p83 = scmp.eq.s32.totalorder %s19, 1
    %p84 = por %p82, %p83
    %p86 = scmp.ne.s32.totalorder %s69, %s85
    %p87 = scmp.eq.s32.totalorder %s19, 0
    %p88 = por %p86, %p87
    %s90 = sadd.s32 %s89, 1
    %p93 = scmp.eq.s32.totalorder %s13, 1
    %p94 = scmp.ne.s32.totalorder %s89, %s91
    %p95 = scmp.eq.s32.totalorder %s13, 0
    %p96 = por %p94, %p95
    %p97 = scmp.ne.s32.totalorder %s89, %s91
    %p98 = scmp.eq.s32.totalorder %s18, 1
    %p99 = por %p97, %p98
    %p100 = scmp.ne.s32.totalorder %s91, %s92
    %p101 = scmp.eq.s32.totalorder %s18, 0
    %p102 = por %p100, %p101
    %p103 = scmp.ne.s32.totalorder %s91, %s92
    %p104 = scmp.eq.s32.totalorder %s19, 1
    %p105 = por %p103, %p104
    %p107 = scmp.ne.s32.totalorder %s92, %s106
    %p108 = scmp.eq.s32.totalorder %s19, 0
    %p109 = por %p107, %p108
    %s111 = sadd.s32 %s110, 1
    %p114 = scmp.eq.s32.totalorder %s13, 1
    %p115 = scmp.ne.s32.totalorder %s110, %s112
    %p116 = scmp.eq.s32.totalorder %s13, 0
    %p117 = por %p115, %p116
    %p118 = scmp.ne.s32.totalorder %s110, %s112
    %p119 = scmp.eq.s32.totalorder %s18, 1
    %p120 = por %p118, %p119
    %p121 = scmp.ne.s32.totalorder %s112, %s113
    %p122 = scmp.eq.s32.totalorder %s18, 0
    %p123 = por %p121, %p122
    %p124 = scmp.ne.s32.totalorder %s112, %s113
    %p125 = scmp.eq.s32.totalorder %s19, 1
    %p126 = por %p124, %p125
    %p128 = scmp.ne.s32.totalorder %s113, %s127
    %p129 = scmp.eq.s32.totalorder %s19, 0
    %p130 = por %p128, %p129
    %s131 = ssub.s32 %s20, %s32
    %p132 = scmp.eq.s32.totalorder %s131, 0
    %s134 = sadd.s32 %s133, 1
    %s135 = scalar_select %p132, %s133, %s134
    %p138 = pneg %p132
    %p139 = scmp.eq.s32.totalorder %s13, 1
    %p140 = por %p138, %p139
    %p141 = scmp.ne.s32.totalorder %s133, %s136
    %p142 = scmp.eq.s32.totalorder %s13, 0
    %p143 = por %p141, %p142
    %p144 = scmp.ne.s32.totalorder %s133, %s136
    %p145 = scmp.eq.s32.totalorder %s18, 1
    %p146 = por %p144, %p145
    %p147 = scmp.ne.s32.totalorder %s136, %s137
    %p148 = scmp.eq.s32.totalorder %s18, 0
    %p149 = por %p147, %p148
    %p150 = scmp.ne.s32.totalorder %s136, %s137
    %p151 = scmp.eq.s32.totalorder %s19, 1
    %p152 = por %p150, %p151
    %p154 = scmp.ne.s32.totalorder %s137, %s153
    %p155 = scmp.eq.s32.totalorder %s19, 0
    %p156 = por %p154, %p155
    %s158 = sadd.s32 %s157, 1
    %p161 = scmp.eq.s32.totalorder %s13, 1
    %p162 = scmp.ne.s32.totalorder %s157, %s159
    %p163 = scmp.eq.s32.totalorder %s13, 0
    %p164 = por %p162, %p163
    %p165 = scmp.ne.s32.totalorder %s157, %s159
    %p166 = scmp.eq.s32.totalorder %s18, 1
    %p167 = por %p165, %p166
    %p168 = scmp.ne.s32.totalorder %s159, %s160
    %p169 = scmp.eq.s32.totalorder %s18, 0
    %p170 = por %p168, %p169
    %p171 = scmp.ne.s32.totalorder %s159, %s160
    %p172 = scmp.eq.s32.totalorder %s19, 1
    %p173 = por %p171, %p172
    %p175 = scmp.ne.s32.totalorder %s160, %s174
    %p176 = scmp.eq.s32.totalorder %s19, 0
    %p177 = por %p175, %p176
    %s178 = ssub.s32 %s21, %s28
    %s179 = ssub.s32 %s20, %s32
    %s180 = sor.u32 %s178, %s179
    %p181 = scmp.eq.s32.totalorder %s180, 0
    %s183 = sadd.s32 %s182, 1
    %s184 = scalar_select %p181, %s182, %s183
    %p187 = pneg %p181
    %p188 = scmp.eq.s32.totalorder %s13, 1
    %p189 = por %p187, %p188
    %p190 = scmp.ne.s32.totalorder %s182, %s185
    %p191 = scmp.eq.s32.totalorder %s13, 0
    %p192 = por %p190, %p191
    %p193 = scmp.ne.s32.totalorder %s182, %s185
    %p194 = scmp.eq.s32.totalorder %s18, 1
    %p195 = por %p193, %p194
    %p196 = scmp.ne.s32.totalorder %s185, %s186
    %p197 = scmp.eq.s32.totalorder %s18, 0
    %p198 = por %p196, %p197
    %p199 = scmp.ne.s32.totalorder %s185, %s186
    %p200 = scmp.eq.s32.totalorder %s19, 1
    %p201 = por %p199, %p200
    %p203 = scmp.ne.s32.totalorder %s186, %s202
    %p204 = scmp.eq.s32.totalorder %s19, 0
    %p205 = por %p203, %p204
    %s206 = ssub.s32 %s21, %s28
    %s207 = ssub.s32 %s20, %s32
    %s208 = sor.u32 %s206, %s207
    %p209 = scmp.eq.s32.totalorder %s208, 0
    %s211 = sadd.s32 %s210, 1
    %s212 = scalar_select %p209, %s210, %s211
    %p215 = pneg %p209
    %p216 = scmp.eq.s32.totalorder %s13, 1
    %p217 = por %p215, %p216
    %p218 = scmp.ne.s32.totalorder %s210, %s213
    %p219 = scmp.eq.s32.totalorder %s13, 0
    %p220 = por %p218, %p219
    %p221 = scmp.ne.s32.totalorder %s210, %s213
    %p222 = scmp.eq.s32.totalorder %s18, 1
    %p223 = por %p221, %p222
    %p224 = scmp.ne.s32.totalorder %s213, %s214
    %p225 = scmp.eq.s32.totalorder %s18, 0
    %p226 = por %p224, %p225
    %p227 = scmp.ne.s32.totalorder %s213, %s214
    %p228 = scmp.eq.s32.totalorder %s19, 1
    %p229 = por %p227, %p228
    %p231 = scmp.ne.s32.totalorder %s214, %s230
    %p232 = scmp.eq.s32.totalorder %s19, 0
    %p233 = por %p231, %p232
    %p234 = scmp.le.s32.totalorder 1, %s13
    %p235 = scmp.lt.s32.totalorder %s13, 3
    %p236 = pnand %p234, %p235
    %p237 = pneg %p236
    // Predicated region
    $region9: #{sfnonet_forward.2} parent=5 // pred_check
      _
    $region10: #{sfnonet_forward.2} parent=5 // pred_check_branch
      %239 = sbr.rel (%p236) target = $region12
    $region11: #{sfnonet_forward.2} parent=5 // pred_region
      %s240 = ssub.s32 %s13, 1
      // Predicated region
      $region13: #{sfnonet_forward.2} parent=11 // pred_check
        %p241 = pneg %p102
      $region14: #{sfnonet_forward.2} parent=11 // pred_check_branch
        %243 = sbr.rel (%p241) target = $region16
      $region15: #{sfnonet_forward.2} parent=11 // pred_region
        _
      $region16: #{sfnonet_forward.2} parent=11 // pred_fallthru
        _
      // Predicated region
      $region17: #{sfnonet_forward.2} parent=11 // pred_check
        %p244 = pneg %p123
      $region18: #{sfnonet_forward.2} parent=11 // pred_check_branch
        %246 = sbr.rel (%p244) target = $region20
      $region19: #{sfnonet_forward.2} parent=11 // pred_region
        _
      $region20: #{sfnonet_forward.2} parent=11 // pred_fallthru
        _
      // Predicated region
      $region21: #{sfnonet_forward.2} parent=11 // pred_check
        %p247 = pneg %p149
      $region22: #{sfnonet_forward.2} parent=11 // pred_check_branch
        %249 = sbr.rel (%p247) target = $region24
      $region23: #{sfnonet_forward.2} parent=11 // pred_region
        %s250 = smul.u32 2, %s22
        %p251 = scmp.lt.s32.totalorder %s250, 1
        %s252 = scalar_select %p251, %s250, 1
        %s253 = smul.addr %s252, 4
        %s254 = scalar_lea.vmem %s4, %s253
        %s255 = smul.u32 2, %s22
      $region24: #{sfnonet_forward.2} parent=11 // pred_fallthru
        _
      // Predicated region
      $region25: #{sfnonet_forward.2} parent=11 // pred_check
        %p256 = pneg %p170
      $region26: #{sfnonet_forward.2} parent=11 // pred_check_branch
        %258 = sbr.rel (%p256) target = $region28
      $region27: #{sfnonet_forward.2} parent=11 // pred_region
        _
      $region28: #{sfnonet_forward.2} parent=11 // pred_fallthru
        _
    $region12: #{sfnonet_forward.2} parent=5 // pred_fallthru
      _
    %p259 = scmp.lt.s32.totalorder %s13, 2
    // Predicated region
    $region29: #{sfnonet_forward.2} parent=5 // pred_check
      %p260 = pneg %p259
    $region30: #{sfnonet_forward.2} parent=5 // pred_check_branch
      %262 = sbr.rel (%p260) target = $region32
    $region31: #{sfnonet_forward.2} parent=5 // pred_region
      // Predicated region
      $region33: #{sfnonet_forward.2} parent=31 // pred_check
        %p263 = pneg %p47
      $region34: #{sfnonet_forward.2} parent=31 // pred_check_branch
        %265 = sbr.rel (%p263) target = $region36
      $region35: #{sfnonet_forward.2} parent=31 // pred_region
        %s266 = smul.u32 2, %s20
        %p267 = scmp.lt.s32.totalorder %s21, 1
        %s268 = scalar_select %p267, %s21, 1
        %p269 = scmp.lt.s32.totalorder %s266, 1
        %s270 = scalar_select %p269, %s266, 1
        %s271 = smul.addr %s268, 2
        %s272 = sadd.s32 %s270, %s271
        %s273 = smul.addr %s272, 4
        %s274 = scalar_lea.vmem %s0, %s273
        %s275 = smul.u32 2, %s20
      $region36: #{sfnonet_forward.2} parent=31 // pred_fallthru
        _
      // Predicated region
      $region37: #{sfnonet_forward.2} parent=31 // pred_check
        %p276 = pneg %p75
      $region38: #{sfnonet_forward.2} parent=31 // pred_check_branch
        %278 = sbr.rel (%p276) target = $region40
      $region39: #{sfnonet_forward.2} parent=31 // pred_region
        %s279 = smul.u32 2, %s20
        %p280 = scmp.lt.s32.totalorder %s21, 1
        %s281 = scalar_select %p280, %s21, 1
        %p282 = scmp.lt.s32.totalorder %s279, 1
        %s283 = scalar_select %p282, %s279, 1
        %s284 = smul.addr %s281, 2
        %s285 = sadd.s32 %s283, %s284
        %s286 = smul.addr %s285, 4
        %s287 = scalar_lea.vmem %s1, %s286
        %s288 = smul.u32 2, %s20
      $region40: #{sfnonet_forward.2} parent=31 // pred_fallthru
        _
      // Predicated region
      $region41: #{sfnonet_forward.2} parent=31 // pred_check
        %p289 = pneg %p192
      $region42: #{sfnonet_forward.2} parent=31 // pred_check_branch
        %291 = sbr.rel (%p289) target = $region44
      $region43: #{sfnonet_forward.2} parent=31 // pred_region
        %s292 = smul.u32 2, %s20
        %p293 = scmp.lt.s32.totalorder %s21, 1
        %s294 = scalar_select %p293, %s21, 1
        %p295 = scmp.lt.s32.totalorder %s292, 1
        %s296 = scalar_select %p295, %s292, 1
        %s297 = smul.addr %s294, 2
        %s298 = sadd.s32 %s296, %s297
        %s299 = smul.addr %s298, 8
        %s300 = scalar_lea.vmem %s6, %s299
        %s301 = smul.u32 2, %s20
      $region44: #{sfnonet_forward.2} parent=31 // pred_fallthru
        _
    $region32: #{sfnonet_forward.2} parent=5 // pred_fallthru
      _
    %p302 = scmp.le.s32.totalorder 1, %s13
    %p303 = scmp.lt.s32.totalorder %s13, 3
    %p304 = pnand %p302, %p303
    %p305 = pneg %p304
    // Predicated region
    $region45: #{sfnonet_forward.2} parent=5 // pred_check
      _
    $region46: #{sfnonet_forward.2} parent=5 // pred_check_branch
      %307 = sbr.rel (%p304) target = $region48
    $region47: #{sfnonet_forward.2} parent=5 // pred_region
      %s308 = ssub.s32 %s13, 1
      %s309 = smul.u32 2, %s22
      %p310 = scmp.lt.s32.totalorder %s23, 1
      %s311 = scalar_select %p310, %s23, 1
      %p312 = scmp.lt.s32.totalorder %s309, 1
      %s313 = scalar_select %p312, %s309, 1
      %s314 = smul.addr %s311, 2
      %s315 = sadd.s32 %s313, %s314
      %s316 = smul.addr %s315, 4
      %s317 = scalar_lea.vmem %s0, %s316
      %p318 = pneg %p53
      %p319 = pneg %p50
      %s320 = smul.u32 2, %s22
      %p321 = scmp.lt.s32.totalorder %s23, 1
      %s322 = scalar_select %p321, %s23, 1
      %p323 = scmp.lt.s32.totalorder %s320, 1
      %s324 = scalar_select %p323, %s320, 1
      %s325 = smul.addr %s322, 2
      %s326 = sadd.s32 %s324, %s325
      %s327 = smul.addr %s326, 4
      %s328 = scalar_lea.vmem %s1, %s327
      %p329 = pneg %p81
      %p330 = pneg %p78
      %p331 = pneg %p102
      %p332 = pneg %p99
      %p333 = pneg %p123
      %p334 = pneg %p120
      %s335 = smul.u32 2, %s22
      %p336 = scmp.lt.s32.totalorder %s335, 1
      %s337 = scalar_select %p336, %s335, 1
      %s338 = smul.addr %s337, 4
      %s339 = scalar_lea.vmem %s4, %s338
      %p340 = pneg %p149
      %p341 = pneg %p146
      %p342 = pneg %p170
      %p343 = pneg %p167
      %s344 = smul.u32 2, %s22
      %p345 = scmp.lt.s32.totalorder %s23, 1
      %s346 = scalar_select %p345, %s23, 1
      %p347 = scmp.lt.s32.totalorder %s344, 1
      %s348 = scalar_select %p347, %s344, 1
      %s349 = smul.addr %s346, 2
      %s350 = sadd.s32 %s348, %s349
      %s351 = smul.addr %s350, 8
      %s352 = scalar_lea.vmem %s6, %s351
      %p353 = pneg %p198
      %p354 = pneg %p195
      %p355 = pneg %p226
      %p356 = pneg %p223
      %s357 = smul.u32 2, %s22
      %p358 = scmp.lt.s32.totalorder %s23, 1
      %s359 = scalar_select %p358, %s23, 1
      %p360 = scmp.lt.s32.totalorder %s357, 1
      %s361 = scalar_select %p360, %s357, 1
      %s362 = smul.addr %s359, 2
      %s363 = sadd.s32 %s361, %s362
      %s364 = smul.addr %s363, 8
      %s365 = scalar_lea.vmem %s7, %s364
      %s366 = smul.u32 2, %s22
      %p367 = scmp.lt.s32.totalorder %s23, 1
      %s368 = scalar_select %p367, %s23, 1
      %p369 = scmp.lt.s32.totalorder %s366, 1
      %s370 = scalar_select %p369, %s366, 1
      %s371 = smul.addr %s368, 2
      %s372 = sadd.s32 %s370, %s371
      %s373 = smul.addr %s372, 4
      %s374 = scalar_lea.vmem %s0, %s373
      %s375 = smul.u32 2, %s22
      %s376 = smul.u32 2, %s22
      %p377 = scmp.lt.s32.totalorder %s23, 1
      %s378 = scalar_select %p377, %s23, 1
      %p379 = scmp.lt.s32.totalorder %s376, 1
      %s380 = scalar_select %p379, %s376, 1
      %s381 = smul.addr %s378, 2
      %s382 = sadd.s32 %s380, %s381
      %s383 = smul.addr %s382, 4
      %s384 = scalar_lea.vmem %s1, %s383
      %s385 = smul.u32 2, %s22
      %s386 = smul.u32 2, %s22
      %p387 = scmp.lt.s32.totalorder %s386, 1
      %s388 = scalar_select %p387, %s386, 1
      %s389 = smul.addr %s388, 4
      %s390 = scalar_lea.vmem %s4, %s389
      %s391 = smul.u32 2, %s22
      %s392 = smul.u32 2, %s22
      %p393 = scmp.lt.s32.totalorder %s23, 1
      %s394 = scalar_select %p393, %s23, 1
      %p395 = scmp.lt.s32.totalorder %s392, 1
      %s396 = scalar_select %p395, %s392, 1
      %s397 = smul.addr %s394, 2
      %s398 = sadd.s32 %s396, %s397
      %s399 = smul.addr %s398, 8
      %s400 = scalar_lea.vmem %s6, %s399
      %s401 = smul.u32 2, %s22
      %s402 = smul.u32 2, %s22
      %p403 = scmp.lt.s32.totalorder %s23, 1
      %s404 = scalar_select %p403, %s23, 1
      %p405 = scmp.lt.s32.totalorder %s402, 1
      %s406 = scalar_select %p405, %s402, 1
      %s407 = smul.addr %s404, 2
      %s408 = sadd.s32 %s406, %s407
      %s409 = smul.addr %s408, 8
      %s410 = scalar_lea.vmem %s7, %s409
      %s411 = smul.u32 2, %s22
      %v413 = vld [vmem:[%s374] sm:$0xf]
      %v414 = vld [vmem:[%s374 + $0x4] sm:$0xf]
      %v415 = vld [vmem:[%s2] sm:$0xf]
      %v416 = vld [vmem:[%s2 + $0x4] sm:$0xf]
      %v417 = vld [vmem:[%s2 + $0x8] sm:$0xf]
      %v418 = vld [vmem:[%s2 + $0xc] sm:$0xf]
      %v419 = vld [vmem:[%s2 + $0x10] sm:$0xf]
      %v420 = vld [vmem:[%s2 + $0x14] sm:$0xf]
      %v421 = vld [vmem:[%s2 + $0x18] sm:$0xf]
      %v422 = vld [vmem:[%s2 + $0x1c] sm:$0xf]
      %v423 = vld [vmem:[%s2 + $0x20] sm:$0xf]
      %v424 = vld [vmem:[%s2 + $0x24] sm:$0xf]
      %v425 = vld [vmem:[%s2 + $0x28] sm:$0xf]
      %v426 = vld [vmem:[%s2 + $0x2c] sm:$0xf]
      %v427 = vld [vmem:[%s2 + $0x30] sm:$0xf]
      %v428 = vld [vmem:[%s2 + $0x34] sm:$0xf]
      %v429 = vld [vmem:[%s2 + $0x38] sm:$0xf]
      %v430 = vld [vmem:[%s2 + $0x3c] sm:$0xf]
      %v431 = vld [vmem:[%s384] sm:$0xf]
      %v432 = vld [vmem:[%s384 + $0x4] sm:$0xf]
      %v433 = vld [vmem:[%s3] sm:$0xf]
      %v434 = vld [vmem:[%s3 + $0x4] sm:$0xf]
      %v435 = vld [vmem:[%s3 + $0x8] sm:$0xf]
      %v436 = vld [vmem:[%s3 + $0xc] sm:$0xf]
      %v437 = vld [vmem:[%s3 + $0x10] sm:$0xf]
      %v438 = vld [vmem:[%s3 + $0x14] sm:$0xf]
      %v439 = vld [vmem:[%s3 + $0x18] sm:$0xf]
      %v440 = vld [vmem:[%s3 + $0x1c] sm:$0xf]
      %v441 = vld [vmem:[%s3 + $0x20] sm:$0xf]
      %v442 = vld [vmem:[%s3 + $0x24] sm:$0xf]
      %v443 = vld [vmem:[%s3 + $0x28] sm:$0xf]
      %v444 = vld [vmem:[%s3 + $0x2c] sm:$0xf]
      %v445 = vld [vmem:[%s3 + $0x30] sm:$0xf]
      %v446 = vld [vmem:[%s3 + $0x34] sm:$0xf]
      %v447 = vld [vmem:[%s3 + $0x38] sm:$0xf]
      %v448 = vld [vmem:[%s3 + $0x3c] sm:$0xf]
      %v451 = vunpack.c.l.b16 %v431
      %v452 = vunpack.c.l.b16 %v432
      %v453 = vpack.c.b16 %v452, %v451
      %v471 = vunpack.c.l.b16 %v433
      %v472 = vunpack.c.l.b16 %v434
      %v473 = vunpack.c.l.b16 %v435
      %v474 = vunpack.c.l.b16 %v436
      %v475 = vunpack.c.l.b16 %v437
      %v476 = vunpack.c.l.b16 %v438
      %v477 = vunpack.c.l.b16 %v439
      %v478 = vunpack.c.l.b16 %v440
      %v479 = vunpack.c.l.b16 %v441
      %v480 = vunpack.c.l.b16 %v442
      %v481 = vunpack.c.l.b16 %v443
      %v482 = vunpack.c.l.b16 %v444
      %v483 = vunpack.c.l.b16 %v445
      %v484 = vunpack.c.l.b16 %v446
      %v485 = vunpack.c.l.b16 %v447
      %v486 = vunpack.c.l.b16 %v448
      %v487 = vpack.c.b16 %v472, %v471
      %v488 = vpack.c.b16 %v474, %v473
      %v489 = vpack.c.b16 %v476, %v475
      %v490 = vpack.c.b16 %v478, %v477
      %v491 = vpack.c.b16 %v480, %v479
      %v492 = vpack.c.b16 %v482, %v481
      %v493 = vpack.c.b16 %v484, %v483
      %v494 = vpack.c.b16 %v486, %v485
      %503 = vmatprep.subr.bf16.mxu0 0
      %504 = vmatpush1.bf16.msra.mxu0 %v494
      %505 = vmatprep.subr.bf16.mxu0 0
      %506 = vmatpush1.bf16.msra.mxu0 %v493
      %507 = vmatprep.subr.bf16.mxu0 0
      %508 = vmatpush1.bf16.msra.mxu0 %v492
      %509 = vmatprep.subr.bf16.mxu0 0
      %510 = vmatpush1.bf16.msra.mxu0 %v491
      %511 = vmatprep.subr.bf16.mxu0 0
      %512 = vmatpush1.bf16.msra.mxu0 %v490
      %513 = vmatprep.subr.bf16.mxu0 0
      %514 = vmatpush1.bf16.msra.mxu0 %v489
      %515 = vmatprep.subr.bf16.mxu0 0
      %516 = vmatpush1.bf16.msra.mxu0 %v488
      %517 = vmatprep.subr.bf16.mxu0 0
      %518 = vmatpush1.bf16.msra.mxu0 %v487
      %519 = vmatprep.subr.bf16.mxu0 0
      %520 = vmatpush2.bf16.msra.mxu0 0
      %521 = vmatprep.subr.bf16.mxu0 0
      %522 = vmatpush2.bf16.msra.mxu0 0
      %523 = vmatprep.subr.bf16.mxu0 0
      %524 = vmatpush2.bf16.msra.mxu0 0
      %525 = vmatprep.subr.bf16.mxu0 0
      %526 = vmatpush2.bf16.msra.mxu0 0
      %527 = vmatprep.subr.bf16.mxu0 0
      %528 = vmatpush2.bf16.msra.mxu0 0
      %529 = vmatprep.subr.bf16.mxu0 0
      %530 = vmatpush2.bf16.msra.mxu0 0
      %531 = vmatprep.subr.bf16.mxu0 0
      %532 = vmatpush2.bf16.msra.mxu0 0
      %533 = vmatprep.subr.bf16.mxu0 0
      %534 = vmatpush2.bf16.msra.mxu0 0
      %535 = vmatprep.mubr.bf16.mxu0 0
      %536 = vmatmul.mubr.bf16.gmra.mxu0 %v453
      %v537 = vpop.f32.mrf.mxu0
      %v538 = vadd.f32 0.0, %v537
      %v539 = vpop.f32.mrf.mxu0
      %v540 = vpop.f32.mrf.mxu0
      %v541 = vadd.f32 0.0, %v540
      %v542 = vpop.f32.mrf.mxu0
      %543 = vdwg.mxu0
      %v546 = vunpack.c.l.b16 %v413
      %v547 = vunpack.c.l.b16 %v414
      %v548 = vpack.c.b16 %v547, %v546
      %v566 = vunpack.c.l.b16 %v415
      %v567 = vunpack.c.l.b16 %v416
      %v568 = vunpack.c.l.b16 %v417
      %v569 = vunpack.c.l.b16 %v418
      %v570 = vunpack.c.l.b16 %v419
      %v571 = vunpack.c.l.b16 %v420
      %v572 = vunpack.c.l.b16 %v421
      %v573 = vunpack.c.l.b16 %v422
      %v574 = vunpack.c.l.b16 %v423
      %v575 = vunpack.c.l.b16 %v424
      %v576 = vunpack.c.l.b16 %v425
      %v577 = vunpack.c.l.b16 %v426
      %v578 = vunpack.c.l.b16 %v427
      %v579 = vunpack.c.l.b16 %v428
      %v580 = vunpack.c.l.b16 %v429
      %v581 = vunpack.c.l.b16 %v430
      %v582 = vpack.c.b16 %v567, %v566
      %v583 = vpack.c.b16 %v569, %v568
      %v584 = vpack.c.b16 %v571, %v570
      %v585 = vpack.c.b16 %v573, %v572
      %v586 = vpack.c.b16 %v575, %v574
      %v587 = vpack.c.b16 %v577, %v576
      %v588 = vpack.c.b16 %v579, %v578
      %v589 = vpack.c.b16 %v581, %v580
      %598 = vmatprep.subr.bf16.mxu0 0
      %599 = vmatpush1.bf16.msra.mxu0 %v589
      %600 = vmatprep.subr.bf16.mxu0 0
      %601 = vmatpush1.bf16.msra.mxu0 %v588
      %602 = vmatprep.subr.bf16.mxu0 0
      %603 = vmatpush1.bf16.msra.mxu0 %v587
      %604 = vmatprep.subr.bf16.mxu0 0
      %605 = vmatpush1.bf16.msra.mxu0 %v586
      %606 = vmatprep.subr.bf16.mxu0 0
      %607 = vmatpush1.bf16.msra.mxu0 %v585
      %608 = vmatprep.subr.bf16.mxu0 0
      %609 = vmatpush1.bf16.msra.mxu0 %v584
      %610 = vmatprep.subr.bf16.mxu0 0
      %611 = vmatpush1.bf16.msra.mxu0 %v583
      %612 = vmatprep.subr.bf16.mxu0 0
      %613 = vmatpush1.bf16.msra.mxu0 %v582
      %614 = vmatprep.subr.bf16.mxu0 0
      %615 = vmatpush2.bf16.msra.mxu0 0
      %616 = vmatprep.subr.bf16.mxu0 0
      %617 = vmatpush2.bf16.msra.mxu0 0
      %618 = vmatprep.subr.bf16.mxu0 0
      %619 = vmatpush2.bf16.msra.mxu0 0
      %620 = vmatprep.subr.bf16.mxu0 0
      %621 = vmatpush2.bf16.msra.mxu0 0
      %622 = vmatprep.subr.bf16.mxu0 0
      %623 = vmatpush2.bf16.msra.mxu0 0
      %624 = vmatprep.subr.bf16.mxu0 0
      %625 = vmatpush2.bf16.msra.mxu0 0
      %626 = vmatprep.subr.bf16.mxu0 0
      %627 = vmatpush2.bf16.msra.mxu0 0
      %628 = vmatprep.subr.bf16.mxu0 0
      %629 = vmatpush2.bf16.msra.mxu0 0
      %630 = vmatprep.mubr.bf16.mxu0 0
      %631 = vmatmul.mubr.bf16.gmra.mxu0 %v548
      %v632 = vpop.f32.mrf.mxu0
      %v633 = vadd.f32 %v538, %v632
      %v634 = vpop.f32.mrf.mxu0
      %v635 = vpop.f32.mrf.mxu0
      %v636 = vadd.f32 %v541, %v635
      %v637 = vpop.f32.mrf.mxu0
      %638 = vdwg.mxu0
      %v639 = vld [vmem:[%s390] sm:$0xf]
      %v640 = vld [vmem:[%s390 + $0x4] sm:$0xf]
      %v641 = vunpack.c.l.bf16 %v639
      %v642 = vunpack.c.l.bf16 %v640
      %v643 = vadd.f32 %v633, %v641
      %v644 = vadd.f32 %v636, %v642
      %v645 = vpack.c.bf16 %v644, %v643
      %v647 = vunpack.c.l.b16 %v645
      %v648 = vunpack.c.h.b16 %v645
      %v649 = vpack.c.b16 %v647, %v647
      %v650 = vpack.c.b16 %v648, %v648
      %653 = vst [vmem:[#allocation2] sm:$0xf] %v649
      %654 = vst [vmem:[#allocation2 + $0x4] sm:$0xf] %v650
      %v655 = vld [vmem:[#allocation2] sm:$0xf]
      %v656 = vld [vmem:[#allocation2 + $0x4] sm:$0xf]
      %v657 = vld [vmem:[%s5] sm:$0xf]
      %v658 = vld [vmem:[%s5 + $0x4] sm:$0xf]
      %v659 = vld [vmem:[%s5 + $0x8] sm:$0xf]
      %v660 = vld [vmem:[%s5 + $0xc] sm:$0xf]
      %v661 = vld [vmem:[%s5 + $0x10] sm:$0xf]
      %v662 = vld [vmem:[%s5 + $0x14] sm:$0xf]
      %v663 = vld [vmem:[%s5 + $0x18] sm:$0xf]
      %v664 = vld [vmem:[%s5 + $0x1c] sm:$0xf]
      %v665 = vld [vmem:[%s5 + $0x20] sm:$0xf]
      %v666 = vld [vmem:[%s5 + $0x24] sm:$0xf]
      %v667 = vld [vmem:[%s5 + $0x28] sm:$0xf]
      %v668 = vld [vmem:[%s5 + $0x2c] sm:$0xf]
      %v669 = vld [vmem:[%s5 + $0x30] sm:$0xf]
      %v670 = vld [vmem:[%s5 + $0x34] sm:$0xf]
      %v671 = vld [vmem:[%s5 + $0x38] sm:$0xf]
      %v672 = vld [vmem:[%s5 + $0x3c] sm:$0xf]
      %v673 = vld [vmem:[%s400] sm:$0xff]
      %v674 = vld [vmem:[%s400 + $0x8] sm:$0xff]
      %v677 = vunpack.c.l.b16 %v655
      %v678 = vunpack.c.l.b16 %v656
      %v679 = vpack.c.b16 %v678, %v677
      %v697 = vunpack.c.l.b16 %v657
      %v698 = vunpack.c.l.b16 %v658
      %v699 = vunpack.c.l.b16 %v659
      %v700 = vunpack.c.l.b16 %v660
      %v701 = vunpack.c.l.b16 %v661
      %v702 = vunpack.c.l.b16 %v662
      %v703 = vunpack.c.l.b16 %v663
      %v704 = vunpack.c.l.b16 %v664
      %v705 = vunpack.c.l.b16 %v665
      %v706 = vunpack.c.l.b16 %v666
      %v707 = vunpack.c.l.b16 %v667
      %v708 = vunpack.c.l.b16 %v668
      %v709 = vunpack.c.l.b16 %v669
      %v710 = vunpack.c.l.b16 %v670
      %v711 = vunpack.c.l.b16 %v671
      %v712 = vunpack.c.l.b16 %v672
      %v713 = vpack.c.b16 %v698, %v697
      %v714 = vpack.c.b16 %v700, %v699
      %v715 = vpack.c.b16 %v702, %v701
      %v716 = vpack.c.b16 %v704, %v703
      %v717 = vpack.c.b16 %v706, %v705
      %v718 = vpack.c.b16 %v708, %v707
      %v719 = vpack.c.b16 %v710, %v709
      %v720 = vpack.c.b16 %v712, %v711
      %729 = vmatprep.subr.bf16.mxu0 0
      %730 = vmatpush1.bf16.msra.mxu0 %v720
      %731 = vmatprep.subr.bf16.mxu0 0
      %732 = vmatpush1.bf16.msra.mxu0 %v719
      %733 = vmatprep.subr.bf16.mxu0 0
      %734 = vmatpush1.bf16.msra.mxu0 %v718
      %735 = vmatprep.subr.bf16.mxu0 0
      %736 = vmatpush1.bf16.msra.mxu0 %v717
      %737 = vmatprep.subr.bf16.mxu0 0
      %738 = vmatpush1.bf16.msra.mxu0 %v716
      %739 = vmatprep.subr.bf16.mxu0 0
      %740 = vmatpush1.bf16.msra.mxu0 %v715
      %741 = vmatprep.subr.bf16.mxu0 0
      %742 = vmatpush1.bf16.msra.mxu0 %v714
      %743 = vmatprep.subr.bf16.mxu0 0
      %744 = vmatpush1.bf16.msra.mxu0 %v713
      %745 = vmatprep.subr.bf16.mxu0 0
      %746 = vmatpush2.bf16.msra.mxu0 0
      %747 = vmatprep.subr.bf16.mxu0 0
      %748 = vmatpush2.bf16.msra.mxu0 0
      %749 = vmatprep.subr.bf16.mxu0 0
      %750 = vmatpush2.bf16.msra.mxu0 0
      %751 = vmatprep.subr.bf16.mxu0 0
      %752 = vmatpush2.bf16.msra.mxu0 0
      %753 = vmatprep.subr.bf16.mxu0 0
      %754 = vmatpush2.bf16.msra.mxu0 0
      %755 = vmatprep.subr.bf16.mxu0 0
      %756 = vmatpush2.bf16.msra.mxu0 0
      %757 = vmatprep.subr.bf16.mxu0 0
      %758 = vmatpush2.bf16.msra.mxu0 0
      %759 = vmatprep.subr.bf16.mxu0 0
      %760 = vmatpush2.bf16.msra.mxu0 0
      %761 = vmatprep.mubr.bf16.mxu0 0
      %762 = vmatmul.mubr.bf16.gmra.mxu0 %v679
      %v763 = vpop.f32.mrf.mxu0
      %v764 = vadd.f32 %v673, %v763
      %v765 = vpop.f32.mrf.mxu0
      %v766 = vpop.f32.mrf.mxu0
      %v767 = vadd.f32 %v674, %v766
      %v768 = vpop.f32.mrf.mxu0
      %769 = vdwg.mxu0
      %770 = vst [vmem:[%s410] sm:$0xff] %v764
      %771 = vst [vmem:[%s410 + $0x8] sm:$0xff] %v767
      %s772 = smul.u32 2, %s22
      %p773 = scmp.lt.s32.totalorder %s23, 1
      %s774 = scalar_select %p773, %s23, 1
      %p775 = scmp.lt.s32.totalorder %s772, 1
      %s776 = scalar_select %p775, %s772, 1
      %s777 = smul.addr %s774, 2
      %s778 = sadd.s32 %s776, %s777
      %s779 = smul.addr %s778, 8
      %s780 = scalar_lea.vmem %s7, %s779
      // Predicated region
      $region49: #{sfnonet_forward.2} parent=47 // pred_check
        %p781 = pneg %p223
      $region50: #{sfnonet_forward.2} parent=47 // pred_check_branch
        %783 = sbr.rel (%p781) target = $region52
      $region51: #{sfnonet_forward.2} parent=47 // pred_region
        %s784 = smul.u32 2, %s22
      $region52: #{sfnonet_forward.2} parent=47 // pred_fallthru
        _
    $region48: #{sfnonet_forward.2} parent=5 // pred_fallthru
      _
    %p785 = scmp.le.s32.totalorder 2, %s13
    // Predicated region
    $region53: #{sfnonet_forward.2} parent=5 // pred_check
      %p786 = pneg %p785
    $region54: #{sfnonet_forward.2} parent=5 // pred_check_branch
      %788 = sbr.rel (%p786) target = $region56
    $region55: #{sfnonet_forward.2} parent=5 // pred_region
      %s789 = ssub.s32 %s13, 2
      // Predicated region
      $region57: #{sfnonet_forward.2} parent=55 // pred_check
        %p790 = pneg %p229
      $region58: #{sfnonet_forward.2} parent=55 // pred_check_branch
        %792 = sbr.rel (%p790) target = $region60
      $region59: #{sfnonet_forward.2} parent=55 // pred_region
        %s793 = smul.u32 2, %s24
        %p794 = scmp.lt.s32.totalorder %s25, 1
        %s795 = scalar_select %p794, %s25, 1
        %p796 = scmp.lt.s32.totalorder %s793, 1
        %s797 = scalar_select %p796, %s793, 1
        %s798 = smul.addr %s795, 2
        %s799 = sadd.s32 %s797, %s798
        %s800 = smul.addr %s799, 8
        %s801 = scalar_lea.vmem %s7, %s800
      $region60: #{sfnonet_forward.2} parent=55 // pred_fallthru
        _
    $region56: #{sfnonet_forward.2} parent=5 // pred_fallthru
      _
  $region6: #{sfnonet_forward.2} parent=0 // loop_footer
    %s17 = sadd.s32 1, %s13
  $region7: #{sfnonet_forward.2} parent=0 // loop_footer_branch
    %12 = sbr.rel target = $region3
  $region8: #{sfnonet_forward.2} parent=0 // loop_exit
    _

</llo_original>
